<compile_context>
chip_gen: v5e
topology: v5e:2x2
jax: 0.10.0
libtpu: 0.0.40
codegen_flags: <defaults>
</compile_context>

<pallas_src>
import functools

import jax
import jax.numpy as jnp
from jax.experimental import pallas as pl
from jax.experimental.pallas import tpu as pltpu


# ----------------------------------------------------------------------------
# Small utilities
# ----------------------------------------------------------------------------
def _round_up(v, m):
    return (v + m - 1) // m * m


def _pad_to(a, rows, cols):
    r, c = a.shape
    if rows != r or cols != c:
        a = jnp.pad(a, ((0, rows - r), (0, cols - c)))
    return a


@functools.lru_cache(maxsize=1)
def _multi_tensorcore():
    """True on chips with 2 TensorCores sharing HBM (v7x, and v4/v5p megacore)."""
    try:
        kind = jax.devices()[0].device_kind.lower()
    except Exception:
        return False
    if "v7" in kind or "v4" in kind:
        return True
    if "v5" in kind and "lite" not in kind and "v5e" not in kind:
        return True  # v5p megacore
    return False


# ----------------------------------------------------------------------------
# Pallas kernels
# ----------------------------------------------------------------------------
def _mm_kernel(x_ref, w_ref, b_ref, o_ref, *, relu):
    """out = x @ w + bias (optionally ReLU).  x/w are bf16; f32 accumulation/epilogue."""
    y = jnp.dot(x_ref[...], w_ref[...], preferred_element_type=jnp.float32)
    y = y + b_ref[...]
    if relu:
        y = jnp.maximum(y, 0.0)
    o_ref[...] = y.astype(o_ref.dtype)


def _mm_res_kernel(x_ref, w_ref, b_ref, r_ref, o_ref, *, relu):
    """out = x @ w + bias + residual (optionally ReLU) -- fused residual epilogue."""
    y = jnp.dot(x_ref[...], w_ref[...], preferred_element_type=jnp.float32)
    y = y + b_ref[...] + r_ref[...]
    if relu:
        y = jnp.maximum(y, 0.0)
    o_ref[...] = y.astype(o_ref.dtype)


def _window_reduce_kernel(x_ref, o_ref, *, op, scale):
    """x: (k*k, M, C) stacked windows -> reduce over axis 0 (max or scaled sum)."""
    x = x_ref[...]
    if op == "max":
        r = jnp.max(x, axis=0)
    else:
        r = jnp.sum(x, axis=0) * scale
    o_ref[...] = r.astype(o_ref.dtype)


# ----------------------------------------------------------------------------
# Fused matmul wrapper (weights already BN-folded / padded / bf16)
# ----------------------------------------------------------------------------
def _choose_tiles(pM, pN, multi_tc):
    # N tiling: 512-wide tiles for the wide layers, 256 otherwise; the 128-split of a
    # 256-wide problem is multi-TC only (single-TC chips keep one 256-wide tile).
    if pN >= 1024 and pN % 512 == 0:
        TN = 512
    elif pN >= 512 and pN % 256 == 0:
        TN = 256
    elif pN == 256:
        TN = 128 if multi_tc else 256
    else:
        TN = pN
    # M tiling.
    if pM > 256:
        BM = 256
    elif pM == 256:
        BM = 128 if multi_tc else 256
    else:
        BM = pM
        # Multi-TC: a (1,1) grid leaves the second TensorCore idle -> split M in two.
        if multi_tc and pN // TN == 1 and pM >= 32 and pM % 32 == 0:
            BM = pM // 2
    return BM, TN


def matmul_prepared(x, wp, bp, residual=None, *, n_out, relu):
    """relu?(x:(M,K) @ wp:(pK,pN) + bp [+ residual]) with pre-padded bf16 weights.

    The entire K dimension is taken in a single block (max pK here is 4608, a few MB
    of VMEM), so the grid is just (M-tiles, N-tiles), both parallel.
    """
    M, K = x.shape
    pK, pN = wp.shape
    multi_tc = _multi_tensorcore()

    pM = _round_up(M, 16)
    if pM > 256:
        pM = _round_up(pM, 256)
    BM, TN = _choose_tiles(pM, pN, multi_tc)

    xp = _pad_to(x, pM, pK).astype(jnp.bfloat16)

    in_specs = [
        pl.BlockSpec((BM, pK), lambda i, j: (i, 0)),
        pl.BlockSpec((pK, TN), lambda i, j: (0, j)),
        pl.BlockSpec((1, TN), lambda i, j: (0, j)),
    ]
    args = [xp, wp, bp]
    bytes_accessed = pM * pK * 2 + pK * pN * 2 + pN * 4 + pM * pN * 4

    if residual is None:
        kern = functools.partial(_mm_kernel, relu=relu)
    else:
        rp = residual.astype(jnp.float32)
        if rp.shape != (pM, pN):
            rp = _pad_to(rp, pM, pN)
        in_specs.append(pl.BlockSpec((BM, TN), lambda i, j: (i, j)))
        args.append(rp)
        bytes_accessed += pM * pN * 4
        kern = functools.partial(_mm_res_kernel, relu=relu)

    out = pl.pallas_call(
        kern,
        out_shape=jax.ShapeDtypeStruct((pM, pN), jnp.float32),
        grid_spec=pltpu.PrefetchScalarGridSpec(
            num_scalar_prefetch=0,
            grid=(pM // BM, pN // TN),
            in_specs=in_specs,
            out_specs=pl.BlockSpec((BM, TN), lambda i, j: (i, j)),
        ),
        compiler_params=pltpu.CompilerParams(
            dimension_semantics=("parallel", "parallel")),
        cost_estimate=pl.CostEstimate(
            flops=2 * pM * pN * pK,
            transcendentals=0,
            bytes_accessed=int(bytes_accessed)),
    )(*args)

    if (pM, pN) != (M, n_out):
        out = out[:M, :n_out]
    return out


# ----------------------------------------------------------------------------
# Layout glue: im2col / pooling windows
# ----------------------------------------------------------------------------
def _im2col(x, k, stride, pad):
    """(N,H,W,C) -> (N*Ho*Wo, k*k*C) patches; feature order = (dy, dx, cin)."""
    # TODO(synk): the 3x3 patch gather could be folded into the matmul's K-axis
    # index_map (over (dy,dx,Cin)) to avoid materializing the 9x-duplicated
    # activation; at batch=2 / <=8x8 spatial that traffic is negligible vs weights.
    N, H, W, C = x.shape
    Ho = (H + 2 * pad - k) // stride + 1
    Wo = (W + 2 * pad - k) // stride + 1
    xp = jnp.pad(x, ((0, 0), (pad, pad), (pad, pad), (0, 0)))
    cols = []
    for dy in range(k):
        for dx in range(k):
            cols.append(xp[:, dy:dy + stride * (Ho - 1) + 1:stride,
                           dx:dx + stride * (Wo - 1) + 1:stride, :])
    patches = jnp.concatenate(cols, axis=-1)
    return patches.reshape(N * Ho * Wo, k * k * C), (N, Ho, Wo)


def _extract_windows(x, k, stride, pad, pad_value):
    """(N,H,W,C) -> (k*k, N*Ho*Wo, C) stacked shifted/strided views (layout glue)."""
    N, H, W, C = x.shape
    Ho = (H + 2 * pad - k) // stride + 1
    Wo = (W + 2 * pad - k) // stride + 1
    xp = jnp.pad(x, ((0, 0), (pad, pad), (pad, pad), (0, 0)),
                 constant_values=pad_value)
    views = []
    for dy in range(k):
        for dx in range(k):
            v = xp[:, dy:dy + stride * (Ho - 1) + 1:stride,
                     dx:dx + stride * (Wo - 1) + 1:stride, :]
            views.append(v.reshape(N * Ho * Wo, C))
    return jnp.stack(views, axis=0), (N, Ho, Wo, C)


def _pool2d(x, *, k, stride, pad, op):
    # PyTorch MaxPool2d pads with -inf; AvgPool2d default count_include_pad=True
    # -> pad with 0 and always divide by k*k.
    pad_value = jnp.finfo(jnp.float32).min if op == "max" else 0.0
    win, (N, Ho, Wo, C) = _extract_windows(x, k, stride, pad, pad_value)
    kk, M, Cw = win.shape
    # Lane-dense layout: fold rows into the 128-lane dim when C < 128 so stores are
    # unmasked full-vreg vst instead of masked vst.msk (element-wise reduce over axis 0
    # is invariant to reshaping the trailing (M, C) dims).
    if Cw % 128 != 0 and (M * Cw) % 128 == 0:
        win = win.reshape(kk, (M * Cw) // 128, 128)
    out = pl.pallas_call(
        functools.partial(_window_reduce_kernel, op=op, scale=1.0 / (k * k)),
        out_shape=jax.ShapeDtypeStruct(win.shape[1:], x.dtype),
    )(win)
    return out.reshape(N, Ho, Wo, C)


# ----------------------------------------------------------------------------
# Conv + BN (+ residual) using prepared (BN-folded, padded, bf16) weights
# ----------------------------------------------------------------------------
def conv_bn_prepared(x, wp, bp, residual, *, k, cout, stride, pad, relu):
    cols, (N, Ho, Wo) = _im2col(x, k, stride, pad)
    res2 = None if residual is None else residual.reshape(N * Ho * Wo, -1)
    y = matmul_prepared(cols, wp, bp, res2, n_out=cout, relu=relu)
    return y.reshape(N, Ho, Wo, cout)


@jax.jit
def _stem_jit(x, pre):
    wp, bp = pre
    y = conv_bn_prepared(x, wp, bp, None, k=7, cout=64, stride=2, pad=3, relu=True)
    return _pool2d(y, k=3, stride=2, pad=1, op="max")


@functools.partial(jax.jit, static_argnames=("stride", "cmid", "cout"))
def _residual_block_jit(x, p1, p2, p3, psc, *, stride, cmid, cout):
    out = conv_bn_prepared(x, *p1, None, k=1, cout=cmid, stride=1, pad=0, relu=True)
    out = conv_bn_prepared(out, *p2, None, k=3, cout=cmid, stride=stride, pad=1, relu=True)
    if psc is not None:
        res = conv_bn_prepared(x, *psc, None, k=1, cout=cout, stride=stride, pad=0, relu=False)
    else:
        res = x
    # conv3 + BN + residual add + ReLU fused into a single Pallas matmul epilogue.
    return conv_bn_prepared(out, *p3, res, k=1, cout=cout, stride=1, pad=0, relu=True)


@functools.partial(jax.jit, static_argnames=("num_classes",))
def _head_jit(x, fc1, fc2, *, num_classes):
    x = _pool2d(x, k=3, stride=7, pad=1, op="mean")
    N, Ho, Wo, C = x.shape
    # torch.flatten(start_dim=1) on NCHW -> channel-major flatten
    x = jnp.transpose(x, (0, 3, 1, 2)).reshape(N, C * Ho * Wo)
    x = matmul_prepared(x, *fc1, n_out=fc1[0].shape[1], relu=False)  # 1024 == padded width
    x = matmul_prepared(x, *fc2, n_out=num_classes, relu=False)
    return x


# ----------------------------------------------------------------------------
# Deterministic raw parameters + one-time preparation (BN fold / pad / bf16)
# ----------------------------------------------------------------------------
class _ParamGen:
    def __init__(self, seed=0):
        self._key = jax.random.PRNGKey(seed)
        self._n = 0

    def _next(self):
        self._n += 1
        return jax.random.fold_in(self._key, self._n)

    def conv(self, k, cin, cout):
        std = 1.0 / (k * k * cin) ** 0.5
        return jax.random.normal(self._next(), (k, k, cin, cout), jnp.float32) * std

    def bn(self, c):
        gamma = 1.0 + 0.1 * jax.random.normal(self._next(), (c,), jnp.float32)
        beta = 0.1 * jax.random.normal(self._next(), (c,), jnp.float32)
        mean = 0.1 * jax.random.normal(self._next(), (c,), jnp.float32)
        var = 0.5 + jax.random.uniform(self._next(), (c,), jnp.float32)
        return gamma, beta, mean, var

    def fc(self, cin, cout):
        std = 1.0 / cin ** 0.5
        w = jax.random.normal(self._next(), (cin, cout), jnp.float32) * std
        b = jax.random.normal(self._next(), (cout,), jnp.float32) * std
        return w, b


def _conv_bn_raw(pg, k, cin, cout):
    return (pg.conv(k, cin, cout),) + pg.bn(cout)


def _make_layer_raw(pg, block_num, inch, ouch):
    blocks = [{
        "conv1": _conv_bn_raw(pg, 1, inch, ouch),
        "conv2": _conv_bn_raw(pg, 3, ouch, ouch),
        "conv3": _conv_bn_raw(pg, 1, ouch, 4 * ouch),
        "shortcut": _conv_bn_raw(pg, 1, inch, 4 * ouch),
    }]
    for _ in range(1, block_num):
        blocks.append({
            "conv1": _conv_bn_raw(pg, 1, 4 * ouch, ouch),
            "conv2": _conv_bn_raw(pg, 3, ouch, ouch),
            "conv3": _conv_bn_raw(pg, 1, ouch, 4 * ouch),
            "shortcut": None,
        })
    return blocks


def make_resnet_high_params(num_classes=6, each_layernum=(3, 4, 23, 3), seed=0):
    pg = _ParamGen(seed)
    params = {
        "pre": _conv_bn_raw(pg, 7, 3, 64),
        "layer1": _make_layer_raw(pg, each_layernum[0], 64, 64),
        "layer2": _make_layer_raw(pg, each_layernum[1], 256, 128),
        "layer3": _make_layer_raw(pg, each_layernum[2], 512, 256),
        "layer4": _make_layer_raw(pg, each_layernum[3], 1024, 512),
    }
    params["fc1_w"], params["fc1_b"] = pg.fc(2048, 1024)
    params["fc2_w"], params["fc2_b"] = pg.fc(1024, num_classes)
    return params


def _prepare_conv_bn(raw):
    """Fold eval-mode BN into the conv weight/bias, pad to (pK,pN), cast weight to bf16."""
    w, gamma, beta, mean, var = raw
    k, _, cin, cout = w.shape
    scale = gamma / jnp.sqrt(var + 1e-5)
    bias = beta - mean * scale
    wm = w.reshape(-1, cout) * scale[None, :]                 # (k*k*cin, cout)
    pK = _round_up(k * k * cin, 128)
    pN = _round_up(cout, 128)
    wp = _pad_to(wm, pK, pN).astype(jnp.bfloat16)
    bp = _pad_to(bias.reshape(1, -1).astype(jnp.float32), 1, pN)
    return (wp, bp)


def _prepare_fc(w, b):
    pK = _round_up(w.shape[0], 128)
    pN = _round_up(w.shape[1], 128)
    wp = _pad_to(w, pK, pN).astype(jnp.bfloat16)
    bp = _pad_to(b.reshape(1, -1).astype(jnp.float32), 1, pN)
    return (wp, bp)


def prepare_resnet_high_params(raw):
    """One-time weight preparation; the per-forward path only touches bf16 weights."""
    prep = {"pre": _prepare_conv_bn(raw["pre"])}
    for name in ("layer1", "layer2", "layer3", "layer4"):
        prep[name] = [{
            "conv1": _prepare_conv_bn(blk["conv1"]),
            "conv2": _prepare_conv_bn(blk["conv2"]),
            "conv3": _prepare_conv_bn(blk["conv3"]),
            "shortcut": None if blk["shortcut"] is None else _prepare_conv_bn(blk["shortcut"]),
        } for blk in raw[name]]
    prep["fc1"] = _prepare_fc(raw["fc1_w"], raw["fc1_b"])
    prep["fc2"] = _prepare_fc(raw["fc2_w"], raw["fc2_b"])
    return prep


# ----------------------------------------------------------------------------
# Forward
# ----------------------------------------------------------------------------
_LAYER_CFG = (("layer1", 64, 1), ("layer2", 128, 2), ("layer3", 256, 2), ("layer4", 512, 2))


def resnet_high_forward(x_nchw, prep, num_classes=6):
    x = jnp.transpose(x_nchw, (0, 2, 3, 1))       # NCHW -> NHWC
    x = _stem_jit(x, prep["pre"])                 # 7x7/2 conv + BN + ReLU + 3x3/2 maxpool
    for name, cmid, lstride in _LAYER_CFG:
        for bi, blk in enumerate(prep[name]):
            x = _residual_block_jit(
                x, blk["conv1"], blk["conv2"], blk["conv3"], blk["shortcut"],
                stride=lstride if bi == 0 else 1, cmid=cmid, cout=4 * cmid)
    return _head_jit(x, prep["fc1"], prep["fc2"], num_classes=num_classes)


if __name__ == "__main__":
    key = jax.random.PRNGKey(0)
    # Small input consistent with the architecture: 32x32 spatial reduces to 1x1
    # after the /32 downsampling, so flatten -> 2048 features as fc1 expects.
    x = jax.random.normal(key, (2, 3, 32, 32), jnp.float32)

    raw = make_resnet_high_params(num_classes=6, each_layernum=(3, 4, 23, 3), seed=0)
    prep = prepare_resnet_high_params(raw)   # one-time BN fold + pad + bf16 cast

    y = resnet_high_forward(x, prep, num_classes=6)
    y = jax.block_until_ready(y)

    assert y.shape == (2, 6), y.shape
    assert bool(jnp.all(jnp.isfinite(y)))
    print("KERNEL_OK")
</pallas_src>

<mosaic_0001>
module attributes {stable_mosaic.version = 11 : i64} {
  func.func @_mm_kernel(%arg0: i32, %arg1: i32, %arg2: memref<256x256xbf16, #tpu.memory_space<vmem>>, %arg3: memref<256x128xbf16, #tpu.memory_space<vmem>>, %arg4: memref<1x128xf32, #tpu.memory_space<vmem>>, %arg5: memref<256x128xf32, #tpu.memory_space<vmem>>) attributes {dimension_semantics = [#tpu.dimension_semantics<parallel>, #tpu.dimension_semantics<parallel>], iteration_bounds = array<i64: 2, 1>, scalar_prefetch = 0 : i64, scratch_operands = 0 : i64, tpu.core_type = #tpu.core_type<tc>, window_params = [{transform_indices = @transform_0, window_bounds = array<i64: 256, 256>}, {transform_indices = @transform_1, window_bounds = array<i64: 256, 128>}, {transform_indices = @transform_2, window_bounds = array<i64: 1, 128>}, {transform_indices = @transform_3, window_bounds = array<i64: 256, 128>}]} {
    %c0 = arith.constant 0 : index
    %c0_0 = arith.constant 0 : index
    %0 = vector.load %arg2[%c0, %c0_0] : memref<256x256xbf16, #tpu.memory_space<vmem>>, vector<256x256xbf16>
    %c0_1 = arith.constant 0 : index
    %c0_2 = arith.constant 0 : index
    %1 = vector.load %arg3[%c0_1, %c0_2] : memref<256x128xbf16, #tpu.memory_space<vmem>>, vector<256x128xbf16>
    %cst = arith.constant dense<0.000000e+00> : vector<256x128xf32>
    %2 = tpu.matmul %0, %1, %cst {dimension_numbers = #tpu.dot_dimension_numbers<[1], [0], [0], [1], [0, 0, 1, 1], [], []>} : vector<256x256xbf16>, vector<256x128xbf16>, vector<256x128xf32> -> vector<256x128xf32>
    %c0_3 = arith.constant 0 : index
    %c0_4 = arith.constant 0 : index
    %3 = vector.load %arg4[%c0_3, %c0_4] : memref<1x128xf32, #tpu.memory_space<vmem>>, vector<1x128xf32>
    %4 = vector.broadcast %3 : vector<1x128xf32> to vector<256x128xf32>
    %5 = arith.addf %2, %4 : vector<256x128xf32>
    %cst_5 = arith.constant 0.000000e+00 : f32
    %6 = vector.broadcast %cst_5 : f32 to vector<256x128xf32>
    %7 = arith.maximumf %5, %6 : vector<256x128xf32>
    %c0_6 = arith.constant 0 : index
    %c0_7 = arith.constant 0 : index
    %8 = vector.load %arg5[%c0_6, %c0_7] : memref<256x128xf32, #tpu.memory_space<vmem>>, vector<256x128xf32>
    tpu.vector_store %arg5[%c0_6, %c0_7], %7 {strides = array<i32>} : memref<256x128xf32, #tpu.memory_space<vmem>>, vector<256x128xf32>,
    return
  }
  func.func @transform_0(%arg0: i32, %arg1: i32) -> (i32, i32) {
    %c0_i32 = arith.constant 0 : i32
    %c0_i32_0 = arith.constant 0 : i32
    return %arg0, %c0_i32 : i32, i32
  }
  func.func @transform_1(%arg0: i32, %arg1: i32) -> (i32, i32) {
    %c0_i32 = arith.constant 0 : i32
    %c0_i32_0 = arith.constant 0 : i32
    return %c0_i32, %arg1 : i32, i32
  }
  func.func @transform_2(%arg0: i32, %arg1: i32) -> (i32, i32) {
    %c0_i32 = arith.constant 0 : i32
    %c0_i32_0 = arith.constant 0 : i32
    return %c0_i32, %arg1 : i32, i32
  }
  func.func @transform_3(%arg0: i32, %arg1: i32) -> (i32, i32) {
    %c0_i32 = arith.constant 0 : i32
    return %arg0, %arg1 : i32, i32
  }
}

module attributes {stable_mosaic.version = 11 : i64} {
  func.func @_window_reduce_kernel(%arg0: memref<9x64x128xf32, #tpu.memory_space<vmem>>, %arg1: memref<64x128xf32, #tpu.memory_space<vmem>>) attributes {dimension_semantics = [], scalar_prefetch = 0 : i64, scratch_operands = 0 : i64, tpu.core_type = #tpu.core_type<tc>} {
    %c0 = arith.constant 0 : index
    %c0_0 = arith.constant 0 : index
    %c0_1 = arith.constant 0 : index
    %0 = vector.load %arg0[%c0, %c0_0, %c0_1] : memref<9x64x128xf32, #tpu.memory_space<vmem>>, vector<9x64x128xf32>
    %cst = arith.constant dense<0xFF800000> : vector<64x128xf32>
    %1 = vector.multi_reduction <maximumf>, %0, %cst [0] : vector<9x64x128xf32> to vector<64x128xf32>
    %c0_2 = arith.constant 0 : index
    %c0_3 = arith.constant 0 : index
    %2 = vector.load %arg1[%c0_2, %c0_3] : memref<64x128xf32, #tpu.memory_space<vmem>>, vector<64x128xf32>
    tpu.vector_store %arg1[%c0_2, %c0_3], %1 {strides = array<i32>} : memref<64x128xf32, #tpu.memory_space<vmem>>, vector<64x128xf32>,
    return
  }
}

</mosaic_0001>

<llo_original>
// kernel: _stem_jit.3
$region0: #{_stem_jit.3}
  #allocation0 [shape = 'u32[]', space=smem, size = 0x4, offset = 0x4, fixed_abs, tag = 'smem constant byte address 0x4 - core index']
  #allocation1 [shape = 'u32[72,128]{1,0:T(1,128)}', space=vmem, size = 0x9000, scoped, tag = 'internal scratch']
  %s0 = inlined_call_operand.vmem [shape: f32[9,64,128], index: 0, kind: input, shape index: {}]
  %s1 = inlined_call_operand.vmem [shape: f32[64,128], index: 1, kind: output, shape index: {}]
  %s2 = sld [smem:[#allocation0]]
  $region14: #{_stem_jit.3} parent=0
    _
  %s4 = ssub.s32 1, %s2
  %s5 = scalar_select 0, %s4, %s2
  // Predicated region
  $region2: #{_stem_jit.3} parent=0 // pred_check
    _
  $region3: #{_stem_jit.3} parent=0 // pred_check_branch
    %7 = sbr.rel (0) target = $region5
  $region4: #{_stem_jit.3} parent=0 // pred_region
    _
  $region5: #{_stem_jit.3} parent=0 // pred_fallthru
    _
  %v8 = vld [vmem:[%s0] sm:$0xff]
  %v9 = vld [vmem:[%s0 + $0x8] sm:$0xff]
  %v10 = vld [vmem:[%s0 + $0x10] sm:$0xff]
  %v11 = vld [vmem:[%s0 + $0x18] sm:$0xff]
  %v12 = vld [vmem:[%s0 + $0x20] sm:$0xff]
  %v13 = vld [vmem:[%s0 + $0x28] sm:$0xff]
  %v14 = vld [vmem:[%s0 + $0x30] sm:$0xff]
  %v15 = vld [vmem:[%s0 + $0x38] sm:$0xff]
  %v16 = vld [vmem:[%s0 + $0x40] sm:$0xff]
  %v17 = vld [vmem:[%s0 + $0x48] sm:$0xff]
  %v18 = vld [vmem:[%s0 + $0x50] sm:$0xff]
  %v19 = vld [vmem:[%s0 + $0x58] sm:$0xff]
  %v20 = vld [vmem:[%s0 + $0x60] sm:$0xff]
  %v21 = vld [vmem:[%s0 + $0x68] sm:$0xff]
  %v22 = vld [vmem:[%s0 + $0x70] sm:$0xff]
  %v23 = vld [vmem:[%s0 + $0x78] sm:$0xff]
  %v24 = vld [vmem:[%s0 + $0x80] sm:$0xff]
  %v25 = vld [vmem:[%s0 + $0x88] sm:$0xff]
  %v26 = vld [vmem:[%s0 + $0x90] sm:$0xff]
  %v27 = vld [vmem:[%s0 + $0x98] sm:$0xff]
  %v28 = vld [vmem:[%s0 + $0xa0] sm:$0xff]
  %v29 = vld [vmem:[%s0 + $0xa8] sm:$0xff]
  %v30 = vld [vmem:[%s0 + $0xb0] sm:$0xff]
  %v31 = vld [vmem:[%s0 + $0xb8] sm:$0xff]
  %v32 = vld [vmem:[%s0 + $0xc0] sm:$0xff]
  %v33 = vld [vmem:[%s0 + $0xc8] sm:$0xff]
  %v34 = vld [vmem:[%s0 + $0xd0] sm:$0xff]
  %v35 = vld [vmem:[%s0 + $0xd8] sm:$0xff]
  %v36 = vld [vmem:[%s0 + $0xe0] sm:$0xff]
  %v37 = vld [vmem:[%s0 + $0xe8] sm:$0xff]
  %v38 = vld [vmem:[%s0 + $0xf0] sm:$0xff]
  %v39 = vld [vmem:[%s0 + $0xf8] sm:$0xff]
  %v40 = vld [vmem:[%s0 + $0x100] sm:$0xff]
  %v41 = vld [vmem:[%s0 + $0x108] sm:$0xff]
  %v42 = vld [vmem:[%s0 + $0x110] sm:$0xff]
  %v43 = vld [vmem:[%s0 + $0x118] sm:$0xff]
  %v44 = vld [vmem:[%s0 + $0x120] sm:$0xff]
  %v45 = vld [vmem:[%s0 + $0x128] sm:$0xff]
  %v46 = vld [vmem:[%s0 + $0x130] sm:$0xff]
  %v47 = vld [vmem:[%s0 + $0x138] sm:$0xff]
  %v48 = vld [vmem:[%s0 + $0x140] sm:$0xff]
  %v49 = vld [vmem:[%s0 + $0x148] sm:$0xff]
  %v50 = vld [vmem:[%s0 + $0x150] sm:$0xff]
  %v51 = vld [vmem:[%s0 + $0x158] sm:$0xff]
  %v52 = vld [vmem:[%s0 + $0x160] sm:$0xff]
  %v53 = vld [vmem:[%s0 + $0x168] sm:$0xff]
  %v54 = vld [vmem:[%s0 + $0x170] sm:$0xff]
  %v55 = vld [vmem:[%s0 + $0x178] sm:$0xff]
  %v56 = vld [vmem:[%s0 + $0x180] sm:$0xff]
  %v57 = vld [vmem:[%s0 + $0x188] sm:$0xff]
  %v58 = vld [vmem:[%s0 + $0x190] sm:$0xff]
  %v59 = vld [vmem:[%s0 + $0x198] sm:$0xff]
  %v60 = vld [vmem:[%s0 + $0x1a0] sm:$0xff]
  %v61 = vld [vmem:[%s0 + $0x1a8] sm:$0xff]
  %v62 = vld [vmem:[%s0 + $0x1b0] sm:$0xff]
  %v63 = vld [vmem:[%s0 + $0x1b8] sm:$0xff]
  %v64 = vld [vmem:[%s0 + $0x1c0] sm:$0xff]
  %v65 = vld [vmem:[%s0 + $0x1c8] sm:$0xff]
  %v66 = vld [vmem:[%s0 + $0x1d0] sm:$0xff]
  %v67 = vld [vmem:[%s0 + $0x1d8] sm:$0xff]
  %v68 = vld [vmem:[%s0 + $0x1e0] sm:$0xff]
  %v69 = vld [vmem:[%s0 + $0x1e8] sm:$0xff]
  %v70 = vld [vmem:[%s0 + $0x1f0] sm:$0xff]
  %v71 = vld [vmem:[%s0 + $0x1f8] sm:$0xff]
  %v72 = vld [vmem:[%s0 + $0x200] sm:$0xff]
  %v73 = vld [vmem:[%s0 + $0x208] sm:$0xff]
  %v74 = vld [vmem:[%s0 + $0x210] sm:$0xff]
  %v75 = vld [vmem:[%s0 + $0x218] sm:$0xff]
  %v76 = vld [vmem:[%s0 + $0x220] sm:$0xff]
  %v77 = vld [vmem:[%s0 + $0x228] sm:$0xff]
  %v78 = vld [vmem:[%s0 + $0x230] sm:$0xff]
  %v79 = vld [vmem:[%s0 + $0x238] sm:$0xff]
  %v80 = vmax.f32 %v8, %v16
  %v81 = vmax.f32 %v80, %v24
  %v82 = vmax.f32 %v81, %v32
  %v83 = vmax.f32 %v82, %v40
  %v84 = vmax.f32 %v83, %v48
  %v85 = vmax.f32 %v84, %v56
  %v86 = vmax.f32 %v85, %v64
  %v87 = vmax.f32 %v86, %v72
  %v88 = vmax.f32 %v9, %v17
  %v89 = vmax.f32 %v88, %v25
  %v90 = vmax.f32 %v89, %v33
  %v91 = vmax.f32 %v90, %v41
  %v92 = vmax.f32 %v91, %v49
  %v93 = vmax.f32 %v92, %v57
  %v94 = vmax.f32 %v93, %v65
  %v95 = vmax.f32 %v94, %v73
  %v96 = vmax.f32 %v10, %v18
  %v97 = vmax.f32 %v96, %v26
  %v98 = vmax.f32 %v97, %v34
  %v99 = vmax.f32 %v98, %v42
  %v100 = vmax.f32 %v99, %v50
  %v101 = vmax.f32 %v100, %v58
  %v102 = vmax.f32 %v101, %v66
  %v103 = vmax.f32 %v102, %v74
  %v104 = vmax.f32 %v11, %v19
  %v105 = vmax.f32 %v104, %v27
  %v106 = vmax.f32 %v105, %v35
  %v107 = vmax.f32 %v106, %v43
  %v108 = vmax.f32 %v107, %v51
  %v109 = vmax.f32 %v108, %v59
  %v110 = vmax.f32 %v109, %v67
  %v111 = vmax.f32 %v110, %v75
  %v112 = vmax.f32 %v12, %v20
  %v113 = vmax.f32 %v112, %v28
  %v114 = vmax.f32 %v113, %v36
  %v115 = vmax.f32 %v114, %v44
  %v116 = vmax.f32 %v115, %v52
  %v117 = vmax.f32 %v116, %v60
  %v118 = vmax.f32 %v117, %v68
  %v119 = vmax.f32 %v118, %v76
  %v120 = vmax.f32 %v13, %v21
  %v121 = vmax.f32 %v120, %v29
  %v122 = vmax.f32 %v121, %v37
  %v123 = vmax.f32 %v122, %v45
  %v124 = vmax.f32 %v123, %v53
  %v125 = vmax.f32 %v124, %v61
  %v126 = vmax.f32 %v125, %v69
  %v127 = vmax.f32 %v126, %v77
  %v128 = vmax.f32 %v14, %v22
  %v129 = vmax.f32 %v128, %v30
  %v130 = vmax.f32 %v129, %v38
  %v131 = vmax.f32 %v130, %v46
  %v132 = vmax.f32 %v131, %v54
  %v133 = vmax.f32 %v132, %v62
  %v134 = vmax.f32 %v133, %v70
  %v135 = vmax.f32 %v134, %v78
  %v136 = vmax.f32 %v15, %v23
  %v137 = vmax.f32 %v136, %v31
  %v138 = vmax.f32 %v137, %v39
  %v139 = vmax.f32 %v138, %v47
  %v140 = vmax.f32 %v139, %v55
  %v141 = vmax.f32 %v140, %v63
  %v142 = vmax.f32 %v141, %v71
  %v143 = vmax.f32 %v142, %v79
  %144 = vst [vmem:[%s1] sm:$0xff] %v87
  %145 = vst [vmem:[%s1 + $0x8] sm:$0xff] %v95
  %146 = vst [vmem:[%s1 + $0x10] sm:$0xff] %v103
  %147 = vst [vmem:[%s1 + $0x18] sm:$0xff] %v111
  %148 = vst [vmem:[%s1 + $0x20] sm:$0xff] %v119
  %149 = vst [vmem:[%s1 + $0x28] sm:$0xff] %v127
  %150 = vst [vmem:[%s1 + $0x30] sm:$0xff] %v135
  %151 = vst [vmem:[%s1 + $0x38] sm:$0xff] %v143
  // Predicated region
  $region6: #{_stem_jit.3} parent=0 // pred_check
    _
  $region7: #{_stem_jit.3} parent=0 // pred_check_branch
    %153 = sbr.rel (0) target = $region9
  $region8: #{_stem_jit.3} parent=0 // pred_region
    _
  $region9: #{_stem_jit.3} parent=0 // pred_fallthru
    _
  // Predicated region
  $region10: #{_stem_jit.3} parent=0 // pred_check
    _
  $region11: #{_stem_jit.3} parent=0 // pred_check_branch
    %155 = sbr.rel (0) target = $region13
  $region12: #{_stem_jit.3} parent=0 // pred_region
    _
  $region13: #{_stem_jit.3} parent=0 // pred_fallthru
    _

// kernel: _stem_jit.2
$region0: #{_stem_jit.2}
  #allocation0 [shape = 'u32[]', space=smem, size = 0x4, offset = 0x4, fixed_abs, tag = 'smem constant byte address 0x4 - core index']
  #allocation1 [shape = 'u32[72,128]{1,0:T(1,128)}', space=vmem, size = 0x9000, scoped, tag = 'internal scratch']
  %s0 = inlined_call_operand.vmem [shape: bf16[512,256], index: 0, kind: input, shape index: {}]
  %s1 = inlined_call_operand.vmem [shape: bf16[256,128], index: 1, kind: input, shape index: {}]
  %s2 = inlined_call_operand.vmem [shape: f32[1,128], index: 2, kind: input, shape index: {}]
  %s3 = inlined_call_operand.vmem [shape: f32[512,128], index: 3, kind: output, shape index: {}]
  %s4 = sld [smem:[#allocation0]]
  $region45: #{_stem_jit.2} parent=0
    _
  %s6 = ssub.s32 1, %s4
  %s7 = scalar_select 0, %s6, %s4
  loop: start=0, step=1, limit=4
  $region2: #{_stem_jit.2} parent=0 // loop_pre_header
    _
  $region3: #{_stem_jit.2} parent=0 // loop_header
    %s9 = sphi 0, %s13
    %p10 = scmp.ge.s32.totalorder %s9, 4
    %s16 = sphi 0, %s28
    %s17 = sphi 0, %s24
    %s18 = sphi 0, %s16
    %s19 = sphi 0, %s17
    %s20 = sphi 0, %s18
    %s21 = sphi 0, %s19
    %s31 = sphi 0, %s33
    %s34 = sphi 0, %s31
    %s35 = sphi 0, %s34
    %s51 = sphi 0, %s35
    %s57 = sphi 0, %s59
    %s60 = sphi 0, %s57
    %s61 = sphi 0, %s60
    %s77 = sphi 0, %s61
    %s83 = sphi 0, %s85
    %s86 = sphi 0, %s83
    %s87 = sphi 0, %s86
    %s103 = sphi 0, %s87
    %s111 = sphi 0, %s113
    %s114 = sphi 0, %s111
    %s115 = sphi 0, %s114
    %s131 = sphi 0, %s115
  $region4: #{_stem_jit.2} parent=0 // loop_header_branch
    %12 = sbr.rel (%p10) target = $region8
  $region5: #{_stem_jit.2} parent=0 // loop_body
    %s14 = ssub.s32 %s9, 1
    %s15 = ssub.s32 %s9, 2
    %s22 = sadd.s32 1, %s17
    %p23 = scmp.ge.s32.totalorder %s22, 1
    %s24 = scalar_select %p23, 0, %s22
    %s25 = sadd.s32 1, %s16
    %s26 = scalar_select %p23, %s25, %s16
    %p27 = scmp.ge.s32.totalorder %s26, 2
    %s28 = scalar_select %p27, 0, %s26
    %s29 = ssub.s32 %s16, %s28
    %p30 = scmp.eq.s32.totalorder %s29, 0
    %s32 = sadd.s32 %s31, 1
    %s33 = scalar_select %p30, %s31, %s32
    %p36 = pneg %p30
    %p37 = scmp.eq.s32.totalorder %s9, 1
    %p38 = por %p36, %p37
    %p39 = scmp.ne.s32.totalorder %s31, %s34
    %p40 = scmp.eq.s32.totalorder %s9, 0
    %p41 = por %p39, %p40
    %p42 = scmp.ne.s32.totalorder %s31, %s34
    %p43 = scmp.eq.s32.totalorder %s14, 1
    %p44 = por %p42, %p43
    %p45 = scmp.ne.s32.totalorder %s34, %s35
    %p46 = scmp.eq.s32.totalorder %s14, 0
    %p47 = por %p45, %p46
    %p48 = scmp.ne.s32.totalorder %s34, %s35
    %p49 = scmp.eq.s32.totalorder %s15, 1
    %p50 = por %p48, %p49
    %p52 = scmp.ne.s32.totalorder %s35, %s51
    %p53 = scmp.eq.s32.totalorder %s15, 0
    %p54 = por %p52, %p53
    %s55 = ssub.s32 %s17, %s24
    %p56 = scmp.eq.s32.totalorder %s55, 0
    %s58 = sadd.s32 %s57, 1
    %s59 = scalar_select %p56, %s57, %s58
    %p62 = pneg %p56
    %p63 = scmp.eq.s32.totalorder %s9, 1
    %p64 = por %p62, %p63
    %p65 = scmp.ne.s32.totalorder %s57, %s60
    %p66 = scmp.eq.s32.totalorder %s9, 0
    %p67 = por %p65, %p66
    %p68 = scmp.ne.s32.totalorder %s57, %s60
    %p69 = scmp.eq.s32.totalorder %s14, 1
    %p70 = por %p68, %p69
    %p71 = scmp.ne.s32.totalorder %s60, %s61
    %p72 = scmp.eq.s32.totalorder %s14, 0
    %p73 = por %p71, %p72
    %p74 = scmp.ne.s32.totalorder %s60, %s61
    %p75 = scmp.eq.s32.totalorder %s15, 1
    %p76 = por %p74, %p75
    %p78 = scmp.ne.s32.totalorder %s61, %s77
    %p79 = scmp.eq.s32.totalorder %s15, 0
    %p80 = por %p78, %p79
    %s81 = ssub.s32 %s17, %s24
    %p82 = scmp.eq.s32.totalorder %s81, 0
    %s84 = sadd.s32 %s83, 1
    %s85 = scalar_select %p82, %s83, %s84
    %p88 = pneg %p82
    %p89 = scmp.eq.s32.totalorder %s9, 1
    %p90 = por %p88, %p89
    %p91 = scmp.ne.s32.totalorder %s83, %s86
    %p92 = scmp.eq.s32.totalorder %s9, 0
    %p93 = por %p91, %p92
    %p94 = scmp.ne.s32.totalorder %s83, %s86
    %p95 = scmp.eq.s32.totalorder %s14, 1
    %p96 = por %p94, %p95
    %p97 = scmp.ne.s32.totalorder %s86, %s87
    %p98 = scmp.eq.s32.totalorder %s14, 0
    %p99 = por %p97, %p98
    %p100 = scmp.ne.s32.totalorder %s86, %s87
    %p101 = scmp.eq.s32.totalorder %s15, 1
    %p102 = por %p100, %p101
    %p104 = scmp.ne.s32.totalorder %s87, %s103
    %p105 = scmp.eq.s32.totalorder %s15, 0
    %p106 = por %p104, %p105
    %s107 = ssub.s32 %s16, %s28
    %s108 = ssub.s32 %s17, %s24
    %s109 = sor.u32 %s107, %s108
    %p110 = scmp.eq.s32.totalorder %s109, 0
    %s112 = sadd.s32 %s111, 1
    %s113 = scalar_select %p110, %s111, %s112
    %p116 = pneg %p110
    %p117 = scmp.eq.s32.totalorder %s9, 1
    %p118 = por %p116, %p117
    %p119 = scmp.ne.s32.totalorder %s111, %s114
    %p120 = scmp.eq.s32.totalorder %s9, 0
    %p121 = por %p119, %p120
    %p122 = scmp.ne.s32.totalorder %s111, %s114
    %p123 = scmp.eq.s32.totalorder %s14, 1
    %p124 = por %p122, %p123
    %p125 = scmp.ne.s32.totalorder %s114, %s115
    %p126 = scmp.eq.s32.totalorder %s14, 0
    %p127 = por %p125, %p126
    %p128 = scmp.ne.s32.totalorder %s114, %s115
    %p129 = scmp.eq.s32.totalorder %s15, 1
    %p130 = por %p128, %p129
    %p132 = scmp.ne.s32.totalorder %s115, %s131
    %p133 = scmp.eq.s32.totalorder %s15, 0
    %p134 = por %p132, %p133
    %p135 = scmp.le.s32.totalorder 1, %s9
    %p136 = scmp.lt.s32.totalorder %s9, 3
    %p137 = pnand %p135, %p136
    %p138 = pneg %p137
    // Predicated region
    $region9: #{_stem_jit.2} parent=5 // pred_check
      _
    $region10: #{_stem_jit.2} parent=5 // pred_check_branch
      %140 = sbr.rel (%p137) target = $region12
    $region11: #{_stem_jit.2} parent=5 // pred_region
      %s141 = ssub.s32 %s9, 1
      // Predicated region
      $region13: #{_stem_jit.2} parent=11 // pred_check
        %p142 = pneg %p73
      $region14: #{_stem_jit.2} parent=11 // pred_check_branch
        %144 = sbr.rel (%p142) target = $region16
      $region15: #{_stem_jit.2} parent=11 // pred_region
        %p145 = scmp.lt.s32.totalorder %s19, 0
        %s146 = scalar_select %p145, %s19, 0
        %s147 = smul.addr %s146, 4
        %s148 = scalar_lea.vmem %s1, %s147
      $region16: #{_stem_jit.2} parent=11 // pred_fallthru
        _
      // Predicated region
      $region17: #{_stem_jit.2} parent=11 // pred_check
        %p149 = pneg %p99
      $region18: #{_stem_jit.2} parent=11 // pred_check_branch
        %151 = sbr.rel (%p149) target = $region20
      $region19: #{_stem_jit.2} parent=11 // pred_region
        %p152 = scmp.lt.s32.totalorder %s19, 0
        %s153 = scalar_select %p152, %s19, 0
        %s154 = scalar_lea.vmem %s2, %s153
      $region20: #{_stem_jit.2} parent=11 // pred_fallthru
        _
    $region12: #{_stem_jit.2} parent=5 // pred_fallthru
      _
    %p155 = scmp.lt.s32.totalorder %s9, 2
    // Predicated region
    $region21: #{_stem_jit.2} parent=5 // pred_check
      %p156 = pneg %p155
    $region22: #{_stem_jit.2} parent=5 // pred_check_branch
      %158 = sbr.rel (%p156) target = $region24
    $region23: #{_stem_jit.2} parent=5 // pred_region
      // Predicated region
      $region25: #{_stem_jit.2} parent=23 // pred_check
        %p159 = pneg %p41
      $region26: #{_stem_jit.2} parent=23 // pred_check_branch
        %161 = sbr.rel (%p159) target = $region28
      $region27: #{_stem_jit.2} parent=23 // pred_region
        %s162 = smul.u32 32, %s16
        %p163 = scmp.lt.s32.totalorder %s162, 63
        %s164 = scalar_select %p163, %s162, 63
        %s165 = smul.addr %s164, 2
        %s166 = smul.addr %s165, 4
        %s167 = scalar_lea.vmem %s0, %s166
        %s168 = smul.u32 32, %s16
      $region28: #{_stem_jit.2} parent=23 // pred_fallthru
        _
    $region24: #{_stem_jit.2} parent=5 // pred_fallthru
      _
    %p169 = scmp.le.s32.totalorder 1, %s9
    %p170 = scmp.lt.s32.totalorder %s9, 3
    %p171 = pnand %p169, %p170
    %p172 = pneg %p171
    // Predicated region
    $region29: #{_stem_jit.2} parent=5 // pred_check
      _
    $region30: #{_stem_jit.2} parent=5 // pred_check_branch
      %174 = sbr.rel (%p171) target = $region32
    $region31: #{_stem_jit.2} parent=5 // pred_region
      %s175 = ssub.s32 %s9, 1
      %s176 = smul.u32 32, %s18
      %p177 = scmp.lt.s32.totalorder %s176, 63
      %s178 = scalar_select %p177, %s176, 63
      %s179 = smul.addr %s178, 2
      %s180 = smul.addr %s179, 4
      %s181 = scalar_lea.vmem %s0, %s180
      %p182 = pneg %p47
      %p183 = pneg %p44
      %p184 = scmp.lt.s32.totalorder %s19, 0
      %s185 = scalar_select %p184, %s19, 0
      %s186 = smul.addr %s185, 4
      %s187 = scalar_lea.vmem %s1, %s186
      %p188 = pneg %p73
      %p189 = pneg %p70
      %p190 = scmp.lt.s32.totalorder %s19, 0
      %s191 = scalar_select %p190, %s19, 0
      %s192 = scalar_lea.vmem %s2, %s191
      %p193 = pneg %p99
      %p194 = pneg %p96
      %p195 = pneg %p127
      %p196 = pneg %p124
      %s197 = smul.u32 32, %s18
      %p198 = scmp.lt.s32.totalorder %s197, 63
      %s199 = scalar_select %p198, %s197, 63
      %p200 = scmp.lt.s32.totalorder %s19, 0
      %s201 = scalar_select %p200, %s19, 0
      %s202 = sadd.s32 %s201, %s199
      %s203 = smul.addr %s202, 8
      %s204 = scalar_lea.vmem %s3, %s203
      %s205 = smul.u32 32, %s18
      %p206 = scmp.lt.s32.totalorder %s205, 63
      %s207 = scalar_select %p206, %s205, 63
      %s208 = smul.addr %s207, 2
      %s209 = smul.addr %s208, 4
      %s210 = scalar_lea.vmem %s0, %s209
      %s211 = smul.u32 32, %s18
      %p212 = scmp.lt.s32.totalorder %s19, 0
      %s213 = scalar_select %p212, %s19, 0
      %s214 = smul.addr %s213, 4
      %s215 = scalar_lea.vmem %s1, %s214
      %p216 = scmp.lt.s32.totalorder %s19, 0
      %s217 = scalar_select %p216, %s19, 0
      %s218 = scalar_lea.vmem %s2, %s217
      %s219 = smul.u32 32, %s18
      %p220 = scmp.lt.s32.totalorder %s219, 63
      %s221 = scalar_select %p220, %s219, 63
      %p222 = scmp.lt.s32.totalorder %s19, 0
      %s223 = scalar_select %p222, %s19, 0
      %s224 = sadd.s32 %s223, %s221
      %s225 = smul.addr %s224, 8
      %s226 = scalar_lea.vmem %s3, %s225
      %s227 = smul.u32 32, %s18
      %v228 = vld [vmem:[%s210] sm:$0xff]
      %v229 = vld [vmem:[%s210 + $0x8] sm:$0xff]
      %v230 = vld [vmem:[%s210 + $0x10] sm:$0xff]
      %v231 = vld [vmem:[%s210 + $0x18] sm:$0xff]
      %v232 = vld [vmem:[%s210 + $0x20] sm:$0xff]
      %v233 = vld [vmem:[%s210 + $0x28] sm:$0xff]
      %v234 = vld [vmem:[%s210 + $0x30] sm:$0xff]
      %v235 = vld [vmem:[%s210 + $0x38] sm:$0xff]
      %v236 = vld [vmem:[%s210 + $0x40] sm:$0xff]
      %v237 = vld [vmem:[%s210 + $0x48] sm:$0xff]
      %v238 = vld [vmem:[%s210 + $0x50] sm:$0xff]
      %v239 = vld [vmem:[%s210 + $0x58] sm:$0xff]
      %v240 = vld [vmem:[%s210 + $0x60] sm:$0xff]
      %v241 = vld [vmem:[%s210 + $0x68] sm:$0xff]
      %v242 = vld [vmem:[%s210 + $0x70] sm:$0xff]
      %v243 = vld [vmem:[%s210 + $0x78] sm:$0xff]
      %v244 = vld [vmem:[%s210 + $0x80] sm:$0xff]
      %v245 = vld [vmem:[%s210 + $0x88] sm:$0xff]
      %v246 = vld [vmem:[%s210 + $0x90] sm:$0xff]
      %v247 = vld [vmem:[%s210 + $0x98] sm:$0xff]
      %v248 = vld [vmem:[%s210 + $0xa0] sm:$0xff]
      %v249 = vld [vmem:[%s210 + $0xa8] sm:$0xff]
      %v250 = vld [vmem:[%s210 + $0xb0] sm:$0xff]
      %v251 = vld [vmem:[%s210 + $0xb8] sm:$0xff]
      %v252 = vld [vmem:[%s210 + $0xc0] sm:$0xff]
      %v253 = vld [vmem:[%s210 + $0xc8] sm:$0xff]
      %v254 = vld [vmem:[%s210 + $0xd0] sm:$0xff]
      %v255 = vld [vmem:[%s210 + $0xd8] sm:$0xff]
      %v256 = vld [vmem:[%s210 + $0xe0] sm:$0xff]
      %v257 = vld [vmem:[%s210 + $0xe8] sm:$0xff]
      %v258 = vld [vmem:[%s210 + $0xf0] sm:$0xff]
      %v259 = vld [vmem:[%s210 + $0xf8] sm:$0xff]
      %v260 = vld [vmem:[%s215] sm:$0xf]
      %v261 = vld [vmem:[%s215 + $0x4] sm:$0xf]
      %v262 = vld [vmem:[%s215 + $0x8] sm:$0xf]
      %v263 = vld [vmem:[%s215 + $0xc] sm:$0xf]
      %v264 = vld [vmem:[%s215 + $0x10] sm:$0xf]
      %v265 = vld [vmem:[%s215 + $0x14] sm:$0xf]
      %v266 = vld [vmem:[%s215 + $0x18] sm:$0xf]
      %v267 = vld [vmem:[%s215 + $0x1c] sm:$0xf]
      %v268 = vld [vmem:[%s215 + $0x20] sm:$0xf]
      %v269 = vld [vmem:[%s215 + $0x24] sm:$0xf]
      %v270 = vld [vmem:[%s215 + $0x28] sm:$0xf]
      %v271 = vld [vmem:[%s215 + $0x2c] sm:$0xf]
      %v272 = vld [vmem:[%s215 + $0x30] sm:$0xf]
      %v273 = vld [vmem:[%s215 + $0x34] sm:$0xf]
      %v274 = vld [vmem:[%s215 + $0x38] sm:$0xf]
      %v275 = vld [vmem:[%s215 + $0x3c] sm:$0xf]
      %v276 = vld [vmem:[%s215 + $0x40] sm:$0xf]
      %v277 = vld [vmem:[%s215 + $0x44] sm:$0xf]
      %v278 = vld [vmem:[%s215 + $0x48] sm:$0xf]
      %v279 = vld [vmem:[%s215 + $0x4c] sm:$0xf]
      %v280 = vld [vmem:[%s215 + $0x50] sm:$0xf]
      %v281 = vld [vmem:[%s215 + $0x54] sm:$0xf]
      %v282 = vld [vmem:[%s215 + $0x58] sm:$0xf]
      %v283 = vld [vmem:[%s215 + $0x5c] sm:$0xf]
      %v284 = vld [vmem:[%s215 + $0x60] sm:$0xf]
      %v285 = vld [vmem:[%s215 + $0x64] sm:$0xf]
      %v286 = vld [vmem:[%s215 + $0x68] sm:$0xf]
      %v287 = vld [vmem:[%s215 + $0x6c] sm:$0xf]
      %v288 = vld [vmem:[%s215 + $0x70] sm:$0xf]
      %v289 = vld [vmem:[%s215 + $0x74] sm:$0xf]
      %v290 = vld [vmem:[%s215 + $0x78] sm:$0xf]
      %v291 = vld [vmem:[%s215 + $0x7c] sm:$0xf]
      %v292 = vld [vmem:[%s218] sm:$0x1]
      %v294 = vperm.slane %v292, 0
      %v328 = vunpack.c.l.b16 %v228
      %v329 = vunpack.c.h.b16 %v228
      %v330 = vunpack.c.l.b16 %v229
      %v331 = vunpack.c.h.b16 %v229
      %v332 = vunpack.c.l.b16 %v230
      %v333 = vunpack.c.h.b16 %v230
      %v334 = vunpack.c.l.b16 %v231
      %v335 = vunpack.c.h.b16 %v231
      %v336 = vunpack.c.l.b16 %v232
      %v337 = vunpack.c.h.b16 %v232
      %v338 = vunpack.c.l.b16 %v233
      %v339 = vunpack.c.h.b16 %v233
      %v340 = vunpack.c.l.b16 %v234
      %v341 = vunpack.c.h.b16 %v234
      %v342 = vunpack.c.l.b16 %v235
      %v343 = vunpack.c.h.b16 %v235
      %v344 = vunpack.c.l.b16 %v236
      %v345 = vunpack.c.h.b16 %v236
      %v346 = vunpack.c.l.b16 %v237
      %v347 = vunpack.c.h.b16 %v237
      %v348 = vunpack.c.l.b16 %v238
      %v349 = vunpack.c.h.b16 %v238
      %v350 = vunpack.c.l.b16 %v239
      %v351 = vunpack.c.h.b16 %v239
      %v352 = vunpack.c.l.b16 %v240
      %v353 = vunpack.c.h.b16 %v240
      %v354 = vunpack.c.l.b16 %v241
      %v355 = vunpack.c.h.b16 %v241
      %v356 = vunpack.c.l.b16 %v242
      %v357 = vunpack.c.h.b16 %v242
      %v358 = vunpack.c.l.b16 %v243
      %v359 = vunpack.c.h.b16 %v243
      %v360 = vunpack.c.l.b16 %v244
      %v361 = vunpack.c.h.b16 %v244
      %v362 = vunpack.c.l.b16 %v245
      %v363 = vunpack.c.h.b16 %v245
      %v364 = vunpack.c.l.b16 %v246
      %v365 = vunpack.c.h.b16 %v246
      %v366 = vunpack.c.l.b16 %v247
      %v367 = vunpack.c.h.b16 %v247
      %v368 = vunpack.c.l.b16 %v248
      %v369 = vunpack.c.h.b16 %v248
      %v370 = vunpack.c.l.b16 %v249
      %v371 = vunpack.c.h.b16 %v249
      %v372 = vunpack.c.l.b16 %v250
      %v373 = vunpack.c.h.b16 %v250
      %v374 = vunpack.c.l.b16 %v251
      %v375 = vunpack.c.h.b16 %v251
      %v376 = vunpack.c.l.b16 %v252
      %v377 = vunpack.c.h.b16 %v252
      %v378 = vunpack.c.l.b16 %v253
      %v379 = vunpack.c.h.b16 %v253
      %v380 = vunpack.c.l.b16 %v254
      %v381 = vunpack.c.h.b16 %v254
      %v382 = vunpack.c.l.b16 %v255
      %v383 = vunpack.c.h.b16 %v255
      %v384 = vunpack.c.l.b16 %v256
      %v385 = vunpack.c.h.b16 %v256
      %v386 = vunpack.c.l.b16 %v257
      %v387 = vunpack.c.h.b16 %v257
      %v388 = vunpack.c.l.b16 %v258
      %v389 = vunpack.c.h.b16 %v258
      %v390 = vunpack.c.l.b16 %v259
      %v391 = vunpack.c.h.b16 %v259
      %v392 = vpack.c.b16 %v330, %v328
      %v393 = vpack.c.b16 %v331, %v329
      %v394 = vpack.c.b16 %v334, %v332
      %v395 = vpack.c.b16 %v335, %v333
      %v396 = vpack.c.b16 %v338, %v336
      %v397 = vpack.c.b16 %v339, %v337
      %v398 = vpack.c.b16 %v342, %v340
      %v399 = vpack.c.b16 %v343, %v341
      %v400 = vpack.c.b16 %v346, %v344
      %v401 = vpack.c.b16 %v347, %v345
      %v402 = vpack.c.b16 %v350, %v348
      %v403 = vpack.c.b16 %v351, %v349
      %v404 = vpack.c.b16 %v354, %v352
      %v405 = vpack.c.b16 %v355, %v353
      %v406 = vpack.c.b16 %v358, %v356
      %v407 = vpack.c.b16 %v359, %v357
      %v408 = vpack.c.b16 %v362, %v360
      %v409 = vpack.c.b16 %v363, %v361
      %v410 = vpack.c.b16 %v366, %v364
      %v411 = vpack.c.b16 %v367, %v365
      %v412 = vpack.c.b16 %v370, %v368
      %v413 = vpack.c.b16 %v371, %v369
      %v414 = vpack.c.b16 %v374, %v372
      %v415 = vpack.c.b16 %v375, %v373
      %v416 = vpack.c.b16 %v378, %v376
      %v417 = vpack.c.b16 %v379, %v377
      %v418 = vpack.c.b16 %v382, %v380
      %v419 = vpack.c.b16 %v383, %v381
      %v420 = vpack.c.b16 %v386, %v384
      %v421 = vpack.c.b16 %v387, %v385
      %v422 = vpack.c.b16 %v390, %v388
      %v423 = vpack.c.b16 %v391, %v389
      %v488 = vunpack.c.l.b16 %v260
      %v489 = vunpack.c.l.b16 %v261
      %v490 = vunpack.c.l.b16 %v262
      %v491 = vunpack.c.l.b16 %v263
      %v492 = vunpack.c.l.b16 %v264
      %v493 = vunpack.c.l.b16 %v265
      %v494 = vunpack.c.l.b16 %v266
      %v495 = vunpack.c.l.b16 %v267
      %v496 = vunpack.c.l.b16 %v268
      %v497 = vunpack.c.l.b16 %v269
      %v498 = vunpack.c.l.b16 %v270
      %v499 = vunpack.c.l.b16 %v271
      %v500 = vunpack.c.l.b16 %v272
      %v501 = vunpack.c.l.b16 %v273
      %v502 = vunpack.c.l.b16 %v274
      %v503 = vunpack.c.l.b16 %v275
      %v504 = vunpack.c.l.b16 %v276
      %v505 = vunpack.c.l.b16 %v277
      %v506 = vunpack.c.l.b16 %v278
      %v507 = vunpack.c.l.b16 %v279
      %v508 = vunpack.c.l.b16 %v280
      %v509 = vunpack.c.l.b16 %v281
      %v510 = vunpack.c.l.b16 %v282
      %v511 = vunpack.c.l.b16 %v283
      %v512 = vunpack.c.l.b16 %v284
      %v513 = vunpack.c.l.b16 %v285
      %v514 = vunpack.c.l.b16 %v286
      %v515 = vunpack.c.l.b16 %v287
      %v516 = vunpack.c.l.b16 %v288
      %v517 = vunpack.c.l.b16 %v289
      %v518 = vunpack.c.l.b16 %v290
      %v519 = vunpack.c.l.b16 %v291
      %v520 = vpack.c.b16 %v489, %v488
      %v521 = vpack.c.b16 %v491, %v490
      %v522 = vpack.c.b16 %v493, %v492
      %v523 = vpack.c.b16 %v495, %v494
      %v524 = vpack.c.b16 %v497, %v496
      %v525 = vpack.c.b16 %v499, %v498
      %v526 = vpack.c.b16 %v501, %v500
      %v527 = vpack.c.b16 %v503, %v502
      %v528 = vpack.c.b16 %v505, %v504
      %v529 = vpack.c.b16 %v507, %v506
      %v530 = vpack.c.b16 %v509, %v508
      %v531 = vpack.c.b16 %v511, %v510
      %v532 = vpack.c.b16 %v513, %v512
      %v533 = vpack.c.b16 %v515, %v514
      %v534 = vpack.c.b16 %v517, %v516
      %v535 = vpack.c.b16 %v519, %v518
      %552 = vmatpush.bf16.msra.mxu0 %v527
      %553 = vmatpush.bf16.msra.mxu0 %v526
      %554 = vmatpush.bf16.msra.mxu0 %v525
      %555 = vmatpush.bf16.msra.mxu0 %v524
      %556 = vmatpush.bf16.msra.mxu0 %v523
      %557 = vmatpush.bf16.msra.mxu0 %v522
      %558 = vmatpush.bf16.msra.mxu0 %v521
      %559 = vmatpush.bf16.msra.mxu0 %v520
      %560 = vmatmul.bf16.gmra.mxu0 %v392
      %v561 = vpop.f32.mrf.mxu0
      %v562 = vadd.f32 %v294, %v561
      %v563 = vpop.f32.mrf.mxu0
      %v564 = vadd.f32 %v294, %v563
      %565 = vmatmul.bf16.gmra.mxu0 %v394
      %v566 = vpop.f32.mrf.mxu0
      %v567 = vadd.f32 %v294, %v566
      %v568 = vpop.f32.mrf.mxu0
      %v569 = vadd.f32 %v294, %v568
      %570 = vmatmul.bf16.gmra.mxu0 %v396
      %v571 = vpop.f32.mrf.mxu0
      %v572 = vadd.f32 %v294, %v571
      %v573 = vpop.f32.mrf.mxu0
      %v574 = vadd.f32 %v294, %v573
      %575 = vmatmul.bf16.gmra.mxu0 %v398
      %v576 = vpop.f32.mrf.mxu0
      %v577 = vadd.f32 %v294, %v576
      %v578 = vpop.f32.mrf.mxu0
      %v579 = vadd.f32 %v294, %v578
      %580 = vmatmul.bf16.gmra.mxu0 %v400
      %v581 = vpop.f32.mrf.mxu0
      %v582 = vadd.f32 %v294, %v581
      %v583 = vpop.f32.mrf.mxu0
      %v584 = vadd.f32 %v294, %v583
      %585 = vmatmul.bf16.gmra.mxu0 %v402
      %v586 = vpop.f32.mrf.mxu0
      %v587 = vadd.f32 %v294, %v586
      %v588 = vpop.f32.mrf.mxu0
      %v589 = vadd.f32 %v294, %v588
      %590 = vmatmul.bf16.gmra.mxu0 %v404
      %v591 = vpop.f32.mrf.mxu0
      %v592 = vadd.f32 %v294, %v591
      %v593 = vpop.f32.mrf.mxu0
      %v594 = vadd.f32 %v294, %v593
      %595 = vmatmul.bf16.gmra.mxu0 %v406
      %v596 = vpop.f32.mrf.mxu0
      %v597 = vadd.f32 %v294, %v596
      %v598 = vpop.f32.mrf.mxu0
      %v599 = vadd.f32 %v294, %v598
      %600 = vmatmul.bf16.gmra.mxu0 %v408
      %v601 = vpop.f32.mrf.mxu0
      %v602 = vadd.f32 %v294, %v601
      %v603 = vpop.f32.mrf.mxu0
      %v604 = vadd.f32 %v294, %v603
      %605 = vmatmul.bf16.gmra.mxu0 %v410
      %v606 = vpop.f32.mrf.mxu0
      %v607 = vadd.f32 %v294, %v606
      %v608 = vpop.f32.mrf.mxu0
      %v609 = vadd.f32 %v294, %v608
      %610 = vmatmul.bf16.gmra.mxu0 %v412
      %v611 = vpop.f32.mrf.mxu0
      %v612 = vadd.f32 %v294, %v611
      %v613 = vpop.f32.mrf.mxu0
      %v614 = vadd.f32 %v294, %v613
      %615 = vmatmul.bf16.gmra.mxu0 %v414
      %v616 = vpop.f32.mrf.mxu0
      %v617 = vadd.f32 %v294, %v616
      %v618 = vpop.f32.mrf.mxu0
      %v619 = vadd.f32 %v294, %v618
      %620 = vmatmul.bf16.gmra.mxu0 %v416
      %v621 = vpop.f32.mrf.mxu0
      %v622 = vadd.f32 %v294, %v621
      %v623 = vpop.f32.mrf.mxu0
      %v624 = vadd.f32 %v294, %v623
      %625 = vmatmul.bf16.gmra.mxu0 %v418
      %v626 = vpop.f32.mrf.mxu0
      %v627 = vadd.f32 %v294, %v626
      %v628 = vpop.f32.mrf.mxu0
      %v629 = vadd.f32 %v294, %v628
      %630 = vmatmul.bf16.gmra.mxu0 %v420
      %v631 = vpop.f32.mrf.mxu0
      %v632 = vadd.f32 %v294, %v631
      %v633 = vpop.f32.mrf.mxu0
      %v634 = vadd.f32 %v294, %v633
      %635 = vmatmul.bf16.gmra.mxu0 %v422
      %v636 = vpop.f32.mrf.mxu0
      %v637 = vadd.f32 %v294, %v636
      %v638 = vpop.f32.mrf.mxu0
      %v639 = vadd.f32 %v294, %v638
      %640 = vdwg.mxu0
      %641 = vmatpush.bf16.msra.mxu0 %v535
      %642 = vmatpush.bf16.msra.mxu0 %v534
      %643 = vmatpush.bf16.msra.mxu0 %v533
      %644 = vmatpush.bf16.msra.mxu0 %v532
      %645 = vmatpush.bf16.msra.mxu0 %v531
      %646 = vmatpush.bf16.msra.mxu0 %v530
      %647 = vmatpush.bf16.msra.mxu0 %v529
      %648 = vmatpush.bf16.msra.mxu0 %v528
      %649 = vmatmul.bf16.gmra.mxu0 %v393
      %v650 = vpop.f32.mrf.mxu0
      %v651 = vadd.f32 %v562, %v650
      %v652 = vpop.f32.mrf.mxu0
      %v653 = vadd.f32 %v564, %v652
      %654 = vmatmul.bf16.gmra.mxu0 %v395
      %v655 = vpop.f32.mrf.mxu0
      %v656 = vadd.f32 %v567, %v655
      %v657 = vpop.f32.mrf.mxu0
      %v658 = vadd.f32 %v569, %v657
      %659 = vmatmul.bf16.gmra.mxu0 %v397
      %v660 = vpop.f32.mrf.mxu0
      %v661 = vadd.f32 %v572, %v660
      %v662 = vpop.f32.mrf.mxu0
      %v663 = vadd.f32 %v574, %v662
      %664 = vmatmul.bf16.gmra.mxu0 %v399
      %v665 = vpop.f32.mrf.mxu0
      %v666 = vadd.f32 %v577, %v665
      %v667 = vpop.f32.mrf.mxu0
      %v668 = vadd.f32 %v579, %v667
      %669 = vmatmul.bf16.gmra.mxu0 %v401
      %v670 = vpop.f32.mrf.mxu0
      %v671 = vadd.f32 %v582, %v670
      %v672 = vpop.f32.mrf.mxu0
      %v673 = vadd.f32 %v584, %v672
      %674 = vmatmul.bf16.gmra.mxu0 %v403
      %v675 = vpop.f32.mrf.mxu0
      %v676 = vadd.f32 %v587, %v675
      %v677 = vpop.f32.mrf.mxu0
      %v678 = vadd.f32 %v589, %v677
      %679 = vmatmul.bf16.gmra.mxu0 %v405
      %v680 = vpop.f32.mrf.mxu0
      %v681 = vadd.f32 %v592, %v680
      %v682 = vpop.f32.mrf.mxu0
      %v683 = vadd.f32 %v594, %v682
      %684 = vmatmul.bf16.gmra.mxu0 %v407
      %v685 = vpop.f32.mrf.mxu0
      %v686 = vadd.f32 %v597, %v685
      %v687 = vpop.f32.mrf.mxu0
      %v688 = vadd.f32 %v599, %v687
      %689 = vmatmul.bf16.gmra.mxu0 %v409
      %v690 = vpop.f32.mrf.mxu0
      %v691 = vadd.f32 %v602, %v690
      %v692 = vpop.f32.mrf.mxu0
      %v693 = vadd.f32 %v604, %v692
      %694 = vmatmul.bf16.gmra.mxu0 %v411
      %v695 = vpop.f32.mrf.mxu0
      %v696 = vadd.f32 %v607, %v695
      %v697 = vpop.f32.mrf.mxu0
      %v698 = vadd.f32 %v609, %v697
      %699 = vmatmul.bf16.gmra.mxu0 %v413
      %v700 = vpop.f32.mrf.mxu0
      %v701 = vadd.f32 %v612, %v700
      %v702 = vpop.f32.mrf.mxu0
      %v703 = vadd.f32 %v614, %v702
      %704 = vmatmul.bf16.gmra.mxu0 %v415
      %v705 = vpop.f32.mrf.mxu0
      %v706 = vadd.f32 %v617, %v705
      %v707 = vpop.f32.mrf.mxu0
      %v708 = vadd.f32 %v619, %v707
      %709 = vmatmul.bf16.gmra.mxu0 %v417
      %v710 = vpop.f32.mrf.mxu0
      %v711 = vadd.f32 %v622, %v710
      %v712 = vpop.f32.mrf.mxu0
      %v713 = vadd.f32 %v624, %v712
      %714 = vmatmul.bf16.gmra.mxu0 %v419
      %v715 = vpop.f32.mrf.mxu0
      %v716 = vadd.f32 %v627, %v715
      %v717 = vpop.f32.mrf.mxu0
      %v718 = vadd.f32 %v629, %v717
      %719 = vmatmul.bf16.gmra.mxu0 %v421
      %v720 = vpop.f32.mrf.mxu0
      %v721 = vadd.f32 %v632, %v720
      %v722 = vpop.f32.mrf.mxu0
      %v723 = vadd.f32 %v634, %v722
      %724 = vmatmul.bf16.gmra.mxu0 %v423
      %v725 = vpop.f32.mrf.mxu0
      %v726 = vadd.f32 %v637, %v725
      %v727 = vpop.f32.mrf.mxu0
      %v728 = vadd.f32 %v639, %v727
      %729 = vdwg.mxu0
      %v730 = vmax.f32 %v651, 0.0
      %v731 = vmax.f32 %v653, 0.0
      %v732 = vmax.f32 %v656, 0.0
      %v733 = vmax.f32 %v658, 0.0
      %v734 = vmax.f32 %v661, 0.0
      %v735 = vmax.f32 %v663, 0.0
      %v736 = vmax.f32 %v666, 0.0
      %v737 = vmax.f32 %v668, 0.0
      %v738 = vmax.f32 %v671, 0.0
      %v739 = vmax.f32 %v673, 0.0
      %v740 = vmax.f32 %v676, 0.0
      %v741 = vmax.f32 %v678, 0.0
      %v742 = vmax.f32 %v681, 0.0
      %v743 = vmax.f32 %v683, 0.0
      %v744 = vmax.f32 %v686, 0.0
      %v745 = vmax.f32 %v688, 0.0
      %v746 = vmax.f32 %v691, 0.0
      %v747 = vmax.f32 %v693, 0.0
      %v748 = vmax.f32 %v696, 0.0
      %v749 = vmax.f32 %v698, 0.0
      %v750 = vmax.f32 %v701, 0.0
      %v751 = vmax.f32 %v703, 0.0
      %v752 = vmax.f32 %v706, 0.0
      %v753 = vmax.f32 %v708, 0.0
      %v754 = vmax.f32 %v711, 0.0
      %v755 = vmax.f32 %v713, 0.0
      %v756 = vmax.f32 %v716, 0.0
      %v757 = vmax.f32 %v718, 0.0
      %v758 = vmax.f32 %v721, 0.0
      %v759 = vmax.f32 %v723, 0.0
      %v760 = vmax.f32 %v726, 0.0
      %v761 = vmax.f32 %v728, 0.0
      %762 = vst [vmem:[%s226] sm:$0xff] %v730
      %763 = vst [vmem:[%s226 + $0x8] sm:$0xff] %v731
      %764 = vst [vmem:[%s226 + $0x10] sm:$0xff] %v732
      %765 = vst [vmem:[%s226 + $0x18] sm:$0xff] %v733
      %766 = vst [vmem:[%s226 + $0x20] sm:$0xff] %v734
      %767 = vst [vmem:[%s226 + $0x28] sm:$0xff] %v735
      %768 = vst [vmem:[%s226 + $0x30] sm:$0xff] %v736
      %769 = vst [vmem:[%s226 + $0x38] sm:$0xff] %v737
      %770 = vst [vmem:[%s226 + $0x40] sm:$0xff] %v738
      %771 = vst [vmem:[%s226 + $0x48] sm:$0xff] %v739
      %772 = vst [vmem:[%s226 + $0x50] sm:$0xff] %v740
      %773 = vst [vmem:[%s226 + $0x58] sm:$0xff] %v741
      %774 = vst [vmem:[%s226 + $0x60] sm:$0xff] %v742
      %775 = vst [vmem:[%s226 + $0x68] sm:$0xff] %v743
      %776 = vst [vmem:[%s226 + $0x70] sm:$0xff] %v744
      %777 = vst [vmem:[%s226 + $0x78] sm:$0xff] %v745
      %778 = vst [vmem:[%s226 + $0x80] sm:$0xff] %v746
      %779 = vst [vmem:[%s226 + $0x88] sm:$0xff] %v747
      %780 = vst [vmem:[%s226 + $0x90] sm:$0xff] %v748
      %781 = vst [vmem:[%s226 + $0x98] sm:$0xff] %v749
      %782 = vst [vmem:[%s226 + $0xa0] sm:$0xff] %v750
      %783 = vst [vmem:[%s226 + $0xa8] sm:$0xff] %v751
      %784 = vst [vmem:[%s226 + $0xb0] sm:$0xff] %v752
      %785 = vst [vmem:[%s226 + $0xb8] sm:$0xff] %v753
      %786 = vst [vmem:[%s226 + $0xc0] sm:$0xff] %v754
      %787 = vst [vmem:[%s226 + $0xc8] sm:$0xff] %v755
      %788 = vst [vmem:[%s226 + $0xd0] sm:$0xff] %v756
      %789 = vst [vmem:[%s226 + $0xd8] sm:$0xff] %v757
      %790 = vst [vmem:[%s226 + $0xe0] sm:$0xff] %v758
      %791 = vst [vmem:[%s226 + $0xe8] sm:$0xff] %v759
      %792 = vst [vmem:[%s226 + $0xf0] sm:$0xff] %v760
      %793 = vst [vmem:[%s226 + $0xf8] sm:$0xff] %v761
      %s794 = smul.u32 32, %s18
      %p795 = scmp.lt.s32.totalorder %s794, 63
      %s796 = scalar_select %p795, %s794, 63
      %p797 = scmp.lt.s32.totalorder %s19, 0
      %s798 = scalar_select %p797, %s19, 0
      %s799 = sadd.s32 %s798, %s796
      %s800 = smul.addr %s799, 8
      %s801 = scalar_lea.vmem %s3, %s800
      // Predicated region
      $region33: #{_stem_jit.2} parent=31 // pred_check
        %p802 = pneg %p124
      $region34: #{_stem_jit.2} parent=31 // pred_check_branch
        %804 = sbr.rel (%p802) target = $region36
      $region35: #{_stem_jit.2} parent=31 // pred_region
        %s805 = smul.u32 32, %s18
      $region36: #{_stem_jit.2} parent=31 // pred_fallthru
        _
    $region32: #{_stem_jit.2} parent=5 // pred_fallthru
      _
    %p806 = scmp.le.s32.totalorder 2, %s9
    // Predicated region
    $region37: #{_stem_jit.2} parent=5 // pred_check
      %p807 = pneg %p806
    $region38: #{_stem_jit.2} parent=5 // pred_check_branch
      %809 = sbr.rel (%p807) target = $region40
    $region39: #{_stem_jit.2} parent=5 // pred_region
      %s810 = ssub.s32 %s9, 2
      // Predicated region
      $region41: #{_stem_jit.2} parent=39 // pred_check
        %p811 = pneg %p130
      $region42: #{_stem_jit.2} parent=39 // pred_check_branch
        %813 = sbr.rel (%p811) target = $region44
      $region43: #{_stem_jit.2} parent=39 // pred_region
        %s814 = smul.u32 32, %s20
        %p815 = scmp.lt.s32.totalorder %s814, 63
        %s816 = scalar_select %p815, %s814, 63
        %p817 = scmp.lt.s32.totalorder %s21, 0
        %s818 = scalar_select %p817, %s21, 0
        %s819 = sadd.s32 %s818, %s816
        %s820 = smul.addr %s819, 8
        %s821 = scalar_lea.vmem %s3, %s820
      $region44: #{_stem_jit.2} parent=39 // pred_fallthru
        _
    $region40: #{_stem_jit.2} parent=5 // pred_fallthru
      _
  $region6: #{_stem_jit.2} parent=0 // loop_footer
    %s13 = sadd.s32 1, %s9
  $region7: #{_stem_jit.2} parent=0 // loop_footer_branch
    %8 = sbr.rel target = $region3
  $region8: #{_stem_jit.2} parent=0 // loop_exit
    _

</llo_original>
